<compile_context>
chip_gen: v6e
topology: v6e:2x2x1
jax: 0.10.0
libtpu: 0.0.40
codegen_flags: <defaults>
</compile_context>

<pallas_src>
import jax
import jax.numpy as jnp
from jax import lax
from jax.experimental import pallas as pl
from jax.experimental.pallas import tpu as pltpu


def plstm_kernel(x_ref,       # (TB, 1)  int32  per-row embedding index
                 hc_ref,      # (TB, 2K) f32    fused state [h | C]
                 table_ref,   # (num, 4K)       fused (embedding + bias) table, gates [f,i,o,s]
                 u_ref,       # (K, 4K)         fused recurrent weight, pre-transposed
                 out_ref):    # (TB, 2K) f32    fused new state [new_h | new_C]
    K = u_ref.shape[0]
    num = table_ref.shape[0]
    tb = hc_ref.shape[0]

    h = hc_ref[:, :K]
    c = hc_ref[:, K:].astype(jnp.float32)

    # In-kernel embedding gather: one-hot (TB, num) @ table (num, 4K) on the MXU.
    idx = x_ref[...]                                              # (TB, 1) int32
    rows = lax.broadcasted_iota(jnp.int32, (tb, num), 1)
    one_hot = (rows == idx).astype(table_ref.dtype)               # (TB, num)
    wx = jnp.dot(one_hot, table_ref[...],
                 preferred_element_type=jnp.float32)              # (TB, 4K)

    # Single wide recurrent matmul: (TB, K) @ (K, 4K) -> (TB, 4K), f32 accumulation.
    z = wx + jnp.dot(h.astype(u_ref.dtype), u_ref[...],
                     preferred_element_type=jnp.float32)

    # Two contiguous activation regions instead of four sub-vreg slices.
    gates = jax.nn.sigmoid(z[:, :3 * K])          # [forget | input | output]
    new_info = jnp.tanh(z[:, 3 * K:])
    forget_gate = gates[:, 0 * K:1 * K]
    input_gate = gates[:, 1 * K:2 * K]
    output_gate = gates[:, 2 * K:3 * K]
    # dropout(input_gate)/dropout(output_gate)/dropout(new_h): identity (eval mode)

    new_c = forget_gate * c + input_gate * new_info
    new_h = output_gate * jnp.tanh(new_c)
    out_ref[...] = jnp.concatenate([new_h, new_c], axis=1).astype(out_ref.dtype)


def prepare_params(params, param_dtype=jnp.float32):
    """One-time parameter prep (reuse for every step).

    Use param_dtype=jnp.bfloat16 on v6e/v7x to halve table/weight traffic;
    keep f32 on v5e (no bf16 VPU/EUP path) or when bit-exactness matters.
    """
    # (W + b)[X] == W[X] + b  -> biases folded into the embedding tables.
    wx_table = jnp.concatenate([
        params["forget_W"] + params["forget_U_b"],
        params["input_W"] + params["input_U_b"],
        params["output_W"] + params["output_U_b"],
        params["state_W"] + params["state_U_b"],
    ], axis=1).astype(param_dtype)                                # (num, 4K)
    # Fused recurrent weight, pre-transposed to (K, 4K): lane-dense, plain h @ U.
    u_cat = jnp.concatenate([
        params["forget_U_w"].T, params["input_U_w"].T,
        params["output_U_w"].T, params["state_U_w"].T,
    ], axis=1).astype(param_dtype)                                # (K, 4K)
    return {"WX_table": wx_table, "U": u_cat}


def _round_up(x, m):
    return (x + m - 1) // m * m


def _pick_batch_tile(B, cap):
    """Batch tile: multiple of 8, big (mem-bound kernel), but small enough that
    the batch grid has >= 2 steps when possible (v7x megacore sharding)."""
    tb = min(cap, _round_up(max(B, 1), 8))
    tb = min(tb, max(8, _round_up(pl.cdiv(B, 2), 8)))
    return tb


def personalized_lstm_forward(prepped, X, h, C, *, batch_tile=2048):
    """One PersonalizedLSTM step.  prepped = prepare_params(params)."""
    B, K = h.shape
    table = prepped["WX_table"]                                   # (num, 4K)
    u = prepped["U"]                                              # (K, 4K)
    num = table.shape[0]

    tb = _pick_batch_tile(B, batch_tile)
    Bp = _round_up(B, tb)
    grid = (Bp // tb,)

    # Fused state slab [h | C]; pad batch up to a tile multiple (no divisor search).
    hc = jnp.concatenate([h, C], axis=1).astype(jnp.float32)      # (B, 2K)
    x2 = X.astype(jnp.int32).reshape(B, 1)
    if Bp != B:
        hc = jnp.pad(hc, ((0, Bp - B), (0, 0)))
        x2 = jnp.pad(x2, ((0, Bp - B), (0, 0)))   # padded index 0 is valid; rows discarded

    # VMEM budget: resident table + weight, double-buffered activation tiles, headroom.
    resident = table.size * table.dtype.itemsize + u.size * u.dtype.itemsize
    per_tile = tb * 4 + 2 * (tb * 2 * K * 4)                      # x + hc + out (f32)
    vmem_bytes = resident + 3 * per_tile + (2 << 20)
    try:
        cap = getattr(pltpu.get_tpu_info(), "vmem_capacity_bytes", 64 << 20)
    except Exception:                                             # pragma: no cover
        cap = 64 << 20
    ceiling = max(cap - (8 << 20), 16 << 20)                      # never oversubscribe v7x
    vmem_bytes = int(min(max(vmem_bytes, 4 << 20), ceiling))

    cost = pl.CostEstimate(
        flops=2 * Bp * K * 4 * K + 2 * Bp * num * 4 * K,
        transcendentals=5 * Bp * K,
        bytes_accessed=int(x2.size * 4 + 2 * hc.size * 4
                           + table.size * table.dtype.itemsize
                           + u.size * u.dtype.itemsize),
    )

    out = pl.pallas_call(
        plstm_kernel,
        out_shape=jax.ShapeDtypeStruct((Bp, 2 * K), jnp.float32),
        grid=grid,
        in_specs=[
            pl.BlockSpec((tb, 1), lambda i: (i, 0)),              # X per batch tile
            pl.BlockSpec((tb, 2 * K), lambda i: (i, 0)),          # fused state [h | C]
            pl.BlockSpec((num, 4 * K), lambda i: (0, 0)),         # table: VMEM-resident
            pl.BlockSpec((K, 4 * K), lambda i: (0, 0)),           # weights: VMEM-resident
        ],
        out_specs=pl.BlockSpec((tb, 2 * K), lambda i: (i, 0)),
        input_output_aliases={1: 0},                              # state updated in place
        compiler_params=pltpu.CompilerParams(
            dimension_semantics=("parallel",),
            vmem_limit_bytes=vmem_bytes),
        cost_estimate=cost,
    )(x2, hc, table, u)

    new_h = out[:B, :K]
    new_c = out[:B, K:]
    return new_h, new_c


def _reference_forward(params, X, h, C):
    """Plain-JAX reference replicating the PyTorch forward (eval mode)."""
    def lin(w, b, x):
        return x @ w.T + b
    forget = jax.nn.sigmoid(params["forget_W"][X] + lin(params["forget_U_w"], params["forget_U_b"], h))
    inp = jax.nn.sigmoid(params["input_W"][X] + lin(params["input_U_w"], params["input_U_b"], h))
    new_info = jnp.tanh(params["state_W"][X] + lin(params["state_U_w"], params["state_U_b"], h))
    new_C = forget * C + inp * new_info
    out = jax.nn.sigmoid(params["output_W"][X] + lin(params["output_U_w"], params["output_U_b"], h))
    new_h = out * jnp.tanh(new_C)
    return new_h, new_C


if __name__ == "__main__":
    num, K = 16, 32

    key = jax.random.PRNGKey(0)
    keys = jax.random.split(key, 24)
    ki = iter(keys)

    def emb(k):
        return jax.random.normal(k, (num, K), jnp.float32)

    def lin_w(k):
        bound = 1.0 / jnp.sqrt(K)
        return jax.random.uniform(k, (K, K), jnp.float32, -bound, bound)

    def lin_b(k):
        bound = 1.0 / jnp.sqrt(K)
        return jax.random.uniform(k, (K,), jnp.float32, -bound, bound)

    params = {
        "input_W": emb(next(ki)),  "input_U_w": lin_w(next(ki)),  "input_U_b": lin_b(next(ki)),
        "forget_W": emb(next(ki)), "forget_U_w": lin_w(next(ki)), "forget_U_b": lin_b(next(ki)),
        "output_W": emb(next(ki)), "output_U_w": lin_w(next(ki)), "output_U_b": lin_b(next(ki)),
        "state_W": emb(next(ki)),  "state_U_w": lin_w(next(ki)),  "state_U_b": lin_b(next(ki)),
    }

    prepped = prepare_params(params)          # one-time fuse/fold (reused every step)
    fwd = jax.jit(personalized_lstm_forward)  # jit so state aliasing is copy-free

    # --- test 1: small batch, single tile (B=8 -> tb=8, grid=(1,)) ----------
    B = 8
    X = jax.random.randint(next(ki), (B,), 0, num)
    h = jax.random.normal(next(ki), (B, K), jnp.float32)
    C = jax.random.normal(next(ki), (B, K), jnp.float32)

    new_h, new_C = fwd(prepped, X, h, C)
    jax.block_until_ready((new_h, new_C))
    ref_h, ref_C = _reference_forward(params, X, h, C)
    assert jnp.allclose(new_h, ref_h, atol=1e-5, rtol=1e-5)
    assert jnp.allclose(new_C, ref_C, atol=1e-5, rtol=1e-5)

    # --- test 2: multi-tile grid (B=32 -> tb=16, grid=(2,)) ------------------
    B2 = 32
    X2 = jax.random.randint(next(ki), (B2,), 0, num)
    h2 = jax.random.normal(next(ki), (B2, K), jnp.float32)
    C2 = jax.random.normal(next(ki), (B2, K), jnp.float32)

    new_h2, new_C2 = fwd(prepped, X2, h2, C2)
    jax.block_until_ready((new_h2, new_C2))
    ref_h2, ref_C2 = _reference_forward(params, X2, h2, C2)
    assert jnp.allclose(new_h2, ref_h2, atol=1e-5, rtol=1e-5)
    assert jnp.allclose(new_C2, ref_C2, atol=1e-5, rtol=1e-5)

    # --- test 3: non-multiple batch exercises padding (B=13 -> Bp=16, tb=8) --
    B3 = 13
    X3 = jax.random.randint(next(ki), (B3,), 0, num)
    h3 = jax.random.normal(next(ki), (B3, K), jnp.float32)
    C3 = jax.random.normal(next(ki), (B3, K), jnp.float32)

    new_h3, new_C3 = fwd(prepped, X3, h3, C3)
    jax.block_until_ready((new_h3, new_C3))
    ref_h3, ref_C3 = _reference_forward(params, X3, h3, C3)
    assert jnp.allclose(new_h3, ref_h3, atol=1e-5, rtol=1e-5)
    assert jnp.allclose(new_C3, ref_C3, atol=1e-5, rtol=1e-5)

    print("KERNEL_OK")
</pallas_src>

<mosaic_0001>
module attributes {stable_mosaic.version = 11 : i64} {
  func.func @plstm_kernel(%arg0: i32, %arg1: memref<8x1xi32, #tpu.memory_space<vmem>>, %arg2: memref<8x64xf32, #tpu.memory_space<vmem>>, %arg3: memref<16x128xf32, #tpu.memory_space<vmem>>, %arg4: memref<32x128xf32, #tpu.memory_space<vmem>>, %arg5: memref<8x64xf32, #tpu.memory_space<vmem>>) attributes {dimension_semantics = [#tpu.dimension_semantics<parallel>], iteration_bounds = array<i64: 1>, scalar_prefetch = 0 : i64, scratch_operands = 0 : i64, tpu.core_type = #tpu.core_type<tc>, window_params = [{transform_indices = @transform_0, window_bounds = array<i64: 8, 1>}, {transform_indices = @transform_1, window_bounds = array<i64: 8, 64>}, {pipeline_mode = #tpu.pipeline_mode<synchronous>, transform_indices = @transform_2, window_bounds = array<i64: 16, 128>}, {pipeline_mode = #tpu.pipeline_mode<synchronous>, transform_indices = @transform_3, window_bounds = array<i64: 32, 128>}, {transform_indices = @transform_4, window_bounds = array<i64: 8, 64>}]} {
    %c0 = arith.constant 0 : index
    %c0_0 = arith.constant 0 : index
    %0 = vector.load %arg2[%c0, %c0_0] : memref<8x64xf32, #tpu.memory_space<vmem>>, vector<8x32xf32>
    %c0_1 = arith.constant 0 : index
    %c32 = arith.constant 32 : index
    %1 = vector.load %arg2[%c0_1, %c32] : memref<8x64xf32, #tpu.memory_space<vmem>>, vector<8x32xf32>
    %c0_2 = arith.constant 0 : index
    %c0_3 = arith.constant 0 : index
    %2 = vector.load %arg1[%c0_2, %c0_3] : memref<8x1xi32, #tpu.memory_space<vmem>>, vector<8x1xi32>
    %3 = tpu.iota {dimensions = array<i32: 1>} : vector<8x16xi32>
    %4 = vector.broadcast %2 : vector<8x1xi32> to vector<8x16xi32>
    %5 = arith.cmpi eq, %3, %4 : vector<8x16xi32>
    %6 = arith.extui %5 : vector<8x16xi1> to vector<8x16xi32>
    %7 = arith.sitofp %6 : vector<8x16xi32> to vector<8x16xf32>
    %c0_4 = arith.constant 0 : index
    %c0_5 = arith.constant 0 : index
    %8 = vector.load %arg3[%c0_4, %c0_5] : memref<16x128xf32, #tpu.memory_space<vmem>>, vector<16x128xf32>
    %cst = arith.constant dense<0.000000e+00> : vector<8x128xf32>
    %9 = tpu.matmul %7, %8, %cst {dimension_numbers = #tpu.dot_dimension_numbers<[1], [0], [0], [1], [0, 0, 1, 1], [], []>} : vector<8x16xf32>, vector<16x128xf32>, vector<8x128xf32> -> vector<8x128xf32>
    %c0_6 = arith.constant 0 : index
    %c0_7 = arith.constant 0 : index
    %10 = vector.load %arg4[%c0_6, %c0_7] : memref<32x128xf32, #tpu.memory_space<vmem>>, vector<32x128xf32>
    %cst_8 = arith.constant dense<0.000000e+00> : vector<8x128xf32>
    %11 = tpu.matmul %0, %10, %cst_8 {dimension_numbers = #tpu.dot_dimension_numbers<[1], [0], [0], [1], [0, 0, 1, 1], [], []>} : vector<8x32xf32>, vector<32x128xf32>, vector<8x128xf32> -> vector<8x128xf32>
    %12 = arith.addf %9, %11 : vector<8x128xf32>
    %13 = vector.extract_strided_slice %12 {offsets = [0, 0], sizes = [8, 96], strides = [1, 1]} : vector<8x128xf32> to vector<8x96xf32>
    %14 = arith.negf %13 : vector<8x96xf32>
    %15 = math.exp %14 : vector<8x96xf32>
    %cst_9 = arith.constant 1.000000e+00 : f32
    %16 = vector.broadcast %cst_9 : f32 to vector<8x96xf32>
    %17 = arith.addf %16, %15 : vector<8x96xf32>
    %18 = arith.divf %16, %17 : vector<8x96xf32>
    %19 = vector.extract_strided_slice %12 {offsets = [0, 96], sizes = [8, 32], strides = [1, 1]} : vector<8x128xf32> to vector<8x32xf32>
    %20 = math.tanh %19 : vector<8x32xf32>
    %21 = vector.extract_strided_slice %18 {offsets = [0, 0], sizes = [8, 32], strides = [1, 1]} : vector<8x96xf32> to vector<8x32xf32>
    %22 = vector.extract_strided_slice %18 {offsets = [0, 32], sizes = [8, 32], strides = [1, 1]} : vector<8x96xf32> to vector<8x32xf32>
    %23 = vector.extract_strided_slice %18 {offsets = [0, 64], sizes = [8, 32], strides = [1, 1]} : vector<8x96xf32> to vector<8x32xf32>
    %24 = arith.mulf %21, %1 : vector<8x32xf32>
    %25 = arith.mulf %22, %20 : vector<8x32xf32>
    %26 = arith.addf %24, %25 : vector<8x32xf32>
    %27 = math.tanh %26 : vector<8x32xf32>
    %28 = arith.mulf %23, %27 : vector<8x32xf32>
    %29 = tpu.concatenate %28, %26 in 1 : vector<8x32xf32>, vector<8x32xf32> -> vector<8x64xf32>
    %c0_10 = arith.constant 0 : index
    %c0_11 = arith.constant 0 : index
    %30 = vector.load %arg5[%c0_10, %c0_11] : memref<8x64xf32, #tpu.memory_space<vmem>>, vector<8x64xf32>
    tpu.vector_store %arg5[%c0_10, %c0_11], %29 {strides = array<i32>} : memref<8x64xf32, #tpu.memory_space<vmem>>, vector<8x64xf32>,
    return
  }
  func.func @transform_0(%arg0: i32) -> (i32, i32) {
    %c0_i32 = arith.constant 0 : i32
    %c0_i32_0 = arith.constant 0 : i32
    return %arg0, %c0_i32 : i32, i32
  }
  func.func @transform_1(%arg0: i32) -> (i32, i32) {
    %c0_i32 = arith.constant 0 : i32
    %c0_i32_0 = arith.constant 0 : i32
    return %arg0, %c0_i32 : i32, i32
  }
  func.func @transform_2(%arg0: i32) -> (i32, i32) {
    %c0_i32 = arith.constant 0 : i32
    %c0_i32_0 = arith.constant 0 : i32
    %c0_i32_1 = arith.constant 0 : i32
    return %c0_i32, %c0_i32_0 : i32, i32
  }
  func.func @transform_3(%arg0: i32) -> (i32, i32) {
    %c0_i32 = arith.constant 0 : i32
    %c0_i32_0 = arith.constant 0 : i32
    %c0_i32_1 = arith.constant 0 : i32
    return %c0_i32, %c0_i32_0 : i32, i32
  }
  func.func @transform_4(%arg0: i32) -> (i32, i32) {
    %c0_i32 = arith.constant 0 : i32
    %c0_i32_0 = arith.constant 0 : i32
    return %arg0, %c0_i32 : i32, i32
  }
}

</mosaic_0001>

<llo_original>
// kernel: personalized_lstm_forward.1
$region0: #{personalized_lstm_forward.1}
  #allocation0 [shape = 'u32[]', space=smem, size = 0x4, offset = 0x4, fixed_abs, tag = 'smem constant byte address 0x4 - core index']
  #allocation1 [shape = 'u32[144,128]{1,0:T(1,128)}', space=vmem, size = 0x12000, scoped, tag = 'internal scratch']
  %s0 = inlined_call_operand.vmem [shape: s32[8,1], index: 0, kind: input, shape index: {}]
  %s1 = inlined_call_operand.vmem [shape: f32[8,64], index: 1, kind: input, shape index: {}, may-alias: {1,4}]
  %s2 = inlined_call_operand.hbm [shape: f32[16,128], index: 2, kind: input, shape index: {}]
  %s3 = inlined_call_operand.vmem [shape: f32[32,128], index: 3, kind: input, shape index: {}]
  %s4 = inlined_call_operand.vmem [shape: f32[8,64], index: 4, kind: output, shape index: {}, may-alias: {1,4}]
  %s5 = sld [smem:[#allocation0]]
  $region30: #{personalized_lstm_forward.1} parent=0
    _
  %s7 = ssub.s32 1, %s5
  %s8 = scalar_select 0, %s7, %s5
  $region1: #{personalized_lstm_forward.1} parent=0
    #allocation2 [shape = 'u8[8192]{0}', space=vmem, size = 0x2000, scoped, tag = 'input window, operand 2, single buffered']
    #allocation3 [shape = 's32[1]{0}', space=sflag, size = 0x4, scoped, tag = 'scoped memory for personalized_lstm_forward.1']
    %9 = vsyncpa [#allocation3], 0
    // Predicated region
    $region2: #{personalized_lstm_forward.1} parent=1 // pred_check
      _
    $region3: #{personalized_lstm_forward.1} parent=1 // pred_check_branch
      %11 = sbr.rel (0) target = $region5
    $region4: #{personalized_lstm_forward.1} parent=1 // pred_region
      _
    $region5: #{personalized_lstm_forward.1} parent=1 // pred_fallthru
      _
    // Predicated region
    $region6: #{personalized_lstm_forward.1} parent=1 // pred_check
      _
    $region7: #{personalized_lstm_forward.1} parent=1 // pred_check_branch
      %13 = sbr.rel (0) target = $region9
    $region8: #{personalized_lstm_forward.1} parent=1 // pred_region
      _
    $region9: #{personalized_lstm_forward.1} parent=1 // pred_fallthru
      _
    // Predicated region
    $region10: #{personalized_lstm_forward.1} parent=1 // pred_check
      _
    $region11: #{personalized_lstm_forward.1} parent=1 // pred_check_branch
      %15 = sbr.rel (0) target = $region13
    $region12: #{personalized_lstm_forward.1} parent=1 // pred_region
      %s17 = ssub.s32 256, 256
      %18 = vsyncadd [#allocation3], %s17
      %s19 = sshll.u32 [#allocation2], 4
      %s20 = int_to_ptr.vmem [resolvable:$true] %s19
      %25 = dma.hbm_to_vmem [thread:$0]  %s2, 256, %s20, [#allocation3], 128, 128, 8
    $region13: #{personalized_lstm_forward.1} parent=1 // pred_fallthru
      _
    // Predicated region
    $region14: #{personalized_lstm_forward.1} parent=1 // pred_check
      _
    $region15: #{personalized_lstm_forward.1} parent=1 // pred_check_branch
      %27 = sbr.rel (0) target = $region17
    $region16: #{personalized_lstm_forward.1} parent=1 // pred_region
      _
    $region17: #{personalized_lstm_forward.1} parent=1 // pred_fallthru
      _
    // Predicated region
    $region18: #{personalized_lstm_forward.1} parent=1 // pred_check
      _
    $region19: #{personalized_lstm_forward.1} parent=1 // pred_check_branch
      %29 = sbr.rel (0) target = $region21
    $region20: #{personalized_lstm_forward.1} parent=1 // pred_region
      %30 = dma.done [#allocation3], 256
    $region21: #{personalized_lstm_forward.1} parent=1 // pred_fallthru
      _
    %v31 = vld [vmem:[%s1] sm:$0xff]
    %v32 = vld [vmem:[%s0] sm:$0xff]
    %v33 = vlaneseq
    %v34 = vand.u32 %v33, 127
    %35 = vset.pattern.permute.xlu0 0
    %36 = vperm.xlu0 %35, %v32
    %v37 = vpop.permute.xlu0 %36
    %vm38 = vcmp.eq.s32.totalorder %v34, %v37
    %v39 = vsel %vm38, 1, 0
    %v40 = vcvt.s32.f32 %v39
    %v41 = vld [vmem:[#allocation2] sm:$0xff]
    %v42 = vld [vmem:[#allocation2 + $0x8] sm:$0xff]
    %v43 = vld [vmem:[%s3] sm:$0xff]
    %v44 = vld [vmem:[%s3 + $0x8] sm:$0xff]
    %v45 = vld [vmem:[%s3 + $0x10] sm:$0xff]
    %v46 = vld [vmem:[%s3 + $0x18] sm:$0xff]
    %vm47 = vcmask 261120
    %v49 = vsel %vm47, %v31, 0
    %51 = vmatprep.subr.mxu0 0.0
    %52 = vmatpush1.msra.mxu0 0.0
    %53 = vmatprep.subr.mxu0 0.0
    %54 = vmatpush1.msra.mxu0 0.0
    %55 = vmatprep.subr.mxu0 0.0
    %56 = vmatpush1.msra.mxu0 0.0
    %57 = vmatprep.subr.mxu0 0.0
    %58 = vmatpush1.msra.mxu0 0.0
    %59 = vmatprep.subr.mxu0 0.0
    %60 = vmatpush1.msra.mxu0 0.0
    %61 = vmatprep.subr.mxu0 0.0
    %62 = vmatpush1.msra.mxu0 0.0
    %63 = vmatprep.subr.mxu0 0.0
    %64 = vmatpush1.msra.mxu0 0.0
    %65 = vmatprep.subr.mxu0 0.0
    %66 = vmatpush1.msra.mxu0 0.0
    %67 = vmatprep.subr.mxu0 0.0
    %68 = vmatpush1.msra.mxu0 0.0
    %69 = vmatprep.subr.mxu0 0.0
    %70 = vmatpush1.msra.mxu0 0.0
    %71 = vmatprep.subr.mxu0 0.0
    %72 = vmatpush1.msra.mxu0 0.0
    %73 = vmatprep.subr.mxu0 0.0
    %74 = vmatpush1.msra.mxu0 0.0
    %75 = vmatprep.subr.mxu0 0.0
    %76 = vmatpush1.msra.mxu0 %v46
    %77 = vmatprep.subr.mxu0 0.0
    %78 = vmatpush1.msra.mxu0 %v45
    %79 = vmatprep.subr.mxu0 0.0
    %80 = vmatpush1.msra.mxu0 %v44
    %81 = vmatprep.subr.mxu0 0.0
    %82 = vmatpush1.msra.mxu0 %v43
    %83 = vmatprep.subr.mxu0 0.0
    %84 = vmatpush2.msra.mxu0 0.0
    %85 = vmatprep.subr.mxu0 0.0
    %86 = vmatpush2.msra.mxu0 0.0
    %87 = vmatprep.subr.mxu0 0.0
    %88 = vmatpush2.msra.mxu0 0.0
    %89 = vmatprep.subr.mxu0 0.0
    %90 = vmatpush2.msra.mxu0 0.0
    %91 = vmatprep.subr.mxu0 0.0
    %92 = vmatpush2.msra.mxu0 0.0
    %93 = vmatprep.subr.mxu0 0.0
    %94 = vmatpush2.msra.mxu0 0.0
    %95 = vmatprep.subr.mxu0 0.0
    %96 = vmatpush2.msra.mxu0 0.0
    %97 = vmatprep.subr.mxu0 0.0
    %98 = vmatpush2.msra.mxu0 0.0
    %99 = vmatprep.subr.mxu0 0.0
    %100 = vmatpush2.msra.mxu0 0.0
    %101 = vmatprep.subr.mxu0 0.0
    %102 = vmatpush2.msra.mxu0 0.0
    %103 = vmatprep.subr.mxu0 0.0
    %104 = vmatpush2.msra.mxu0 0.0
    %105 = vmatprep.subr.mxu0 0.0
    %106 = vmatpush2.msra.mxu0 0.0
    %107 = vmatprep.subr.mxu0 0.0
    %108 = vmatpush2.msra.mxu0 0.0
    %109 = vmatprep.subr.mxu0 0.0
    %110 = vmatpush2.msra.mxu0 0.0
    %111 = vmatprep.subr.mxu0 0.0
    %112 = vmatpush2.msra.mxu0 0.0
    %113 = vmatprep.subr.mxu0 0.0
    %114 = vmatpush2.msra.mxu0 0.0
    %115 = vmatprep.mubr.f32.mxu0 0.0
    %116 = vmatmul.mubr.f32.gmra.mxu0 %v49
    %v117 = vpop.f32.mrf.mxu0
    %v118 = vadd.f32 0.0, %v117
    %v119 = vpop.f32.mrf.mxu0
    %120 = vdwg.mxu0
    %vm121 = vcmask 130048
    %v123 = vsel %vm121, %v40, 0
    %125 = vmatprep.subr.mxu0 0.0
    %126 = vmatpush1.msra.mxu0 0.0
    %127 = vmatprep.subr.mxu0 0.0
    %128 = vmatpush1.msra.mxu0 0.0
    %129 = vmatprep.subr.mxu0 0.0
    %130 = vmatpush1.msra.mxu0 0.0
    %131 = vmatprep.subr.mxu0 0.0
    %132 = vmatpush1.msra.mxu0 0.0
    %133 = vmatprep.subr.mxu0 0.0
    %134 = vmatpush1.msra.mxu0 0.0
    %135 = vmatprep.subr.mxu0 0.0
    %136 = vmatpush1.msra.mxu0 0.0
    %137 = vmatprep.subr.mxu0 0.0
    %138 = vmatpush1.msra.mxu0 0.0
    %139 = vmatprep.subr.mxu0 0.0
    %140 = vmatpush1.msra.mxu0 0.0
    %141 = vmatprep.subr.mxu0 0.0
    %142 = vmatpush1.msra.mxu0 0.0
    %143 = vmatprep.subr.mxu0 0.0
    %144 = vmatpush1.msra.mxu0 0.0
    %145 = vmatprep.subr.mxu0 0.0
    %146 = vmatpush1.msra.mxu0 0.0
    %147 = vmatprep.subr.mxu0 0.0
    %148 = vmatpush1.msra.mxu0 0.0
    %149 = vmatprep.subr.mxu0 0.0
    %150 = vmatpush1.msra.mxu0 0.0
    %151 = vmatprep.subr.mxu0 0.0
    %152 = vmatpush1.msra.mxu0 0.0
    %153 = vmatprep.subr.mxu0 0.0
    %154 = vmatpush1.msra.mxu0 %v42
    %155 = vmatprep.subr.mxu0 0.0
    %156 = vmatpush1.msra.mxu0 %v41
    %157 = vmatprep.subr.mxu0 0.0
    %158 = vmatpush2.msra.mxu0 0.0
    %159 = vmatprep.subr.mxu0 0.0
    %160 = vmatpush2.msra.mxu0 0.0
    %161 = vmatprep.subr.mxu0 0.0
    %162 = vmatpush2.msra.mxu0 0.0
    %163 = vmatprep.subr.mxu0 0.0
    %164 = vmatpush2.msra.mxu0 0.0
    %165 = vmatprep.subr.mxu0 0.0
    %166 = vmatpush2.msra.mxu0 0.0
    %167 = vmatprep.subr.mxu0 0.0
    %168 = vmatpush2.msra.mxu0 0.0
    %169 = vmatprep.subr.mxu0 0.0
    %170 = vmatpush2.msra.mxu0 0.0
    %171 = vmatprep.subr.mxu0 0.0
    %172 = vmatpush2.msra.mxu0 0.0
    %173 = vmatprep.subr.mxu0 0.0
    %174 = vmatpush2.msra.mxu0 0.0
    %175 = vmatprep.subr.mxu0 0.0
    %176 = vmatpush2.msra.mxu0 0.0
    %177 = vmatprep.subr.mxu0 0.0
    %178 = vmatpush2.msra.mxu0 0.0
    %179 = vmatprep.subr.mxu0 0.0
    %180 = vmatpush2.msra.mxu0 0.0
    %181 = vmatprep.subr.mxu0 0.0
    %182 = vmatpush2.msra.mxu0 0.0
    %183 = vmatprep.subr.mxu0 0.0
    %184 = vmatpush2.msra.mxu0 0.0
    %185 = vmatprep.subr.mxu0 0.0
    %186 = vmatpush2.msra.mxu0 0.0
    %187 = vmatprep.subr.mxu0 0.0
    %188 = vmatpush2.msra.mxu0 0.0
    %189 = vmatprep.mubr.f32.mxu0 0.0
    %190 = vmatmul.mubr.f32.gmra.mxu0 %v123
    %v191 = vpop.f32.mrf.mxu0
    %v192 = vadd.f32 %v118, %v191
    %v193 = vpop.f32.mrf.mxu0
    %194 = vdwg.mxu0
    %v195 = vxor.u32 %v192, 2147483648
    %v196 = vmul.f32 %v195, 1.442695
    %v197 = vpow.pop %v196
    %v198 = vadd.f32 %v197, 1.0
    %v199 = vrcp.pop %v198
    %v200 = vmul.f32 1.0, %v199
    %v201 = vtanh.pop %v192
    %202 = vrot.lane.b32.xlu0 %v31, 96
    %v203 = vpop.permute.xlu0 %202
    %v205 = vmul.f32 %v200, %v203
    %207 = vrot.lane.b32.xlu0 %v201, 64
    %v208 = vpop.permute.xlu0 %207
    %v210 = vmul.f32 %v200, %v208
    %212 = vrot.lane.b32.xlu0 %v210, 96
    %v213 = vpop.permute.xlu0 %212
    %v215 = vadd.f32 %v205, %v213
    %v216 = vtanh.pop %v215
    %218 = vrot.lane.b32.xlu0 %v216, 64
    %v219 = vpop.permute.xlu0 %218
    %v221 = vmul.f32 %v200, %v219
    %223 = vrot.lane.b32.xlu0 %v221, 64
    %v224 = vpop.permute.xlu0 %223
    %227 = vrot.lane.b32.xlu0 %v215, 32
    %v228 = vpop.permute.xlu0 %227
    %v230 = vsel %vm47, %v224, %v228
    %vm231 = vcmask 523264
    %232 = vst.msk [vmem:[%s4] sm:$0xff] %vm231, %v230
    // Predicated region
    $region22: #{personalized_lstm_forward.1} parent=1 // pred_check
      _
    $region23: #{personalized_lstm_forward.1} parent=1 // pred_check_branch
      %234 = sbr.rel (0) target = $region25
    $region24: #{personalized_lstm_forward.1} parent=1 // pred_region
      _
    $region25: #{personalized_lstm_forward.1} parent=1 // pred_fallthru
      _
    // Predicated region
    $region26: #{personalized_lstm_forward.1} parent=1 // pred_check
      _
    $region27: #{personalized_lstm_forward.1} parent=1 // pred_check_branch
      %236 = sbr.rel (0) target = $region29
    $region28: #{personalized_lstm_forward.1} parent=1 // pred_region
      _
    $region29: #{personalized_lstm_forward.1} parent=1 // pred_fallthru
      _
    %237 = vsyncpa [#allocation3], 1

</llo_original>
